<compile_context>
chip_gen: v7x
topology: tpu7x:2x2x1
jax: 0.10.0
libtpu: 0.0.40
codegen_flags: <defaults>
</compile_context>

<pallas_src>
import functools

import jax
import jax.numpy as jnp
import numpy as np
from jax.experimental import pallas as pl
from jax.experimental.pallas import tpu as pltpu


def sparse_rep_kernel(x_ref, c_ref, ct_ref, intercept_ref, o_ref, *, sparsity):
    """One (batch, pixel-tile) block.

    x_ref:         (D, P)   VMEM  input pixels (channels on sublanes, pixels on lanes)
    c_ref:         (D, K)   VMEM  centers      (grid-invariant block)
    ct_ref:        (K, D)   VMEM  centers^T    (grid-invariant block)
    intercept_ref: (1, 1)   SMEM  scalar bias
    o_ref:         (D, P)   VMEM  output pixels
    """
    xt = x_ref[...]                    # (D, P), native dtype (no forced upcast)
    c = c_ref[...]                     # (D, K)
    ct = ct_ref[...]                   # (K, D)
    bias = intercept_ref[0, 0]

    # similarity = sigmoid(centers^T @ x + intercept)       -> (K, P), f32 accum
    logits = jnp.dot(ct, xt, preferred_element_type=jnp.float32) + bias
    s = jax.nn.sigmoid(logits)

    k_dim = s.shape[0]
    sub = jax.lax.broadcasted_iota(jnp.int32, s.shape, 0)

    # k-th largest similarity per pixel column (matches torch.topk threshold
    # semantics incl. duplicates: remove one occurrence of the current max per
    # step, k-1 times, then take the max).  sparsity is small, so this is a
    # short unrolled loop of cross-sublane reductions (XLU slot, off the HBM
    # critical path).
    w = s
    for _ in range(sparsity - 1):
        m = jnp.max(w, axis=0, keepdims=True)
        first = jnp.min(jnp.where(w == m, sub, k_dim), axis=0, keepdims=True)
        w = jnp.where(sub == first, -jnp.inf, w)
    thresh = jnp.max(w, axis=0, keepdims=True)            # (1, P)

    # similarity * (similarity >= min_coef)
    sparse = s * (s >= thresh).astype(s.dtype)            # (K, P)

    # F.linear(similarity, centers)  ==  centers @ sparse  -> (D, P)
    out = jnp.dot(c, sparse.astype(c.dtype), preferred_element_type=jnp.float32)
    o_ref[...] = out.astype(o_ref.dtype)


def sparse_rep_forward(x, centers, intercept, sparsity, *, tile_p=None):
    """x: (B, in_dim, H, W) NCHW.  Returns (B, in_dim, H, W)."""
    B, D, H, W = x.shape
    in_dim, K = centers.shape
    assert D == in_dim, (D, in_dim)
    sparsity = max(int(sparsity), 1)
    # torch.topk would raise if k > nb_codeword; mirror that instead of
    # silently producing a dense output.
    assert sparsity <= K, "sparsity must be <= nb_codeword"

    HW = H * W
    # Free reshape (no data movement): NCHW -> (B, C, H*W).
    xr = x.reshape(B, D, HW)

    if tile_p is None:
        # Large lane-dense pixel tile; cap so the (K, tile_p) f32 similarity
        # intermediate stays <= ~4 MiB (VMEM/vreg friendly, incl. v7x 64 MiB).
        cap = max(128, ((4 * 1024 * 1024) // (4 * K)) // 128 * 128)
        tile_p = min(2048, cap)
    if HW <= tile_p:
        tile_p = HW                      # full extent is always a legal block dim
    elif tile_p % 128 != 0:
        tile_p = max(128, (tile_p // 128) * 128)

    # Non-divisible HW is fine: the last block is padded by the pipeline; the
    # op is per-pixel-column independent, so padded columns can't corrupt valid
    # ones and their writes are discarded.
    grid = (B, pl.cdiv(HW, tile_p))

    dt = x.dtype
    centers_in = centers.astype(dt)
    centers_t = centers_in.T             # tiny; transposed once in the wrapper
    intercept_smem = intercept.reshape(1, 1).astype(jnp.float32)

    out_flat = pl.pallas_call(
        functools.partial(sparse_rep_kernel, sparsity=sparsity),
        out_shape=jax.ShapeDtypeStruct((B, D, HW), dt),
        grid=grid,
        in_specs=[
            # Batch dim squeezed (None) -> kernel sees (D, tile_p).
            pl.BlockSpec((None, D, tile_p), lambda b, t: (b, 0, t)),
            # Grid-invariant operands (constant index_map -> fetched once,
            # kept resident across grid steps).
            pl.BlockSpec((D, K), lambda b, t: (0, 0)),
            pl.BlockSpec((K, D), lambda b, t: (0, 0)),
            pl.BlockSpec(memory_space=pltpu.MemorySpace.SMEM),
        ],
        out_specs=pl.BlockSpec((None, D, tile_p), lambda b, t: (b, 0, t)),
        compiler_params=pltpu.CompilerParams(
            dimension_semantics=("parallel", "parallel")),
    )(xr, centers_in, centers_t, intercept_smem)

    return out_flat.reshape(B, D, H, W)


def sparse_rep_reference(x, centers, intercept, sparsity):
    """Pure-JAX reference mirroring the PyTorch forward exactly."""
    xt = jnp.transpose(x, (0, 2, 3, 1))                                  # (B,H,W,D)
    s = jax.nn.sigmoid(jnp.einsum("bhwd,dk->bhwk", xt, centers) + intercept[0])
    coef, _ = jax.lax.top_k(s, sparsity)
    thresh = coef[..., -1:]
    sp = s * (s >= thresh).astype(s.dtype)
    out = jnp.einsum("bhwk,dk->bhwd", sp, centers)
    return jnp.transpose(out, (0, 3, 1, 2))


if __name__ == "__main__":
    # Small shapes consistent with the module: NCHW input, in_dim channels.
    B, in_dim, H, W = 2, 8, 16, 16
    nb_codeword = 32
    sparsity = 4

    key = jax.random.PRNGKey(0)
    kx, kc, kb = jax.random.split(key, 3)

    x = jax.random.normal(kx, (B, in_dim, H, W), dtype=jnp.float32)

    # Deterministic parameter init emulating the PyTorch __init__:
    #   centers: kaiming_uniform_ on (in_dim, nb_codeword)
    #   intercept: U(-1, 1), shape (1,)
    bound = float(np.sqrt(6.0 / nb_codeword))
    centers = jax.random.uniform(kc, (in_dim, nb_codeword), jnp.float32,
                                 minval=-bound, maxval=bound)
    intercept = jax.random.uniform(kb, (1,), jnp.float32, minval=-1.0, maxval=1.0)

    out = jax.block_until_ready(sparse_rep_forward(x, centers, intercept, sparsity))
    ref = jax.block_until_ready(sparse_rep_reference(x, centers, intercept, sparsity))

    assert out.shape == (B, in_dim, H, W), out.shape
    np.testing.assert_allclose(np.asarray(out), np.asarray(ref),
                               rtol=1e-5, atol=1e-5)
    print("KERNEL_OK")
</pallas_src>

<mosaic_0001>
module attributes {stable_mosaic.version = 11 : i64} {
  func.func @sparse_rep_kernel(%arg0: i32, %arg1: i32, %arg2: memref<1x8x256xf32, #tpu.memory_space<vmem>>, %arg3: memref<8x32xf32, #tpu.memory_space<vmem>>, %arg4: memref<32x8xf32, #tpu.memory_space<vmem>>, %arg5: memref<1x1xf32, #tpu.memory_space<smem>>, %arg6: memref<1x8x256xf32, #tpu.memory_space<vmem>>) attributes {dimension_semantics = [#tpu.dimension_semantics<parallel>, #tpu.dimension_semantics<parallel>], iteration_bounds = array<i64: 2, 1>, scalar_prefetch = 0 : i64, scratch_operands = 0 : i64, tpu.core_type = #tpu.core_type<tc>, window_params = [{transform_indices = @transform_0, window_bounds = array<i64: 1, 8, 256>}, {pipeline_mode = #tpu.pipeline_mode<synchronous>, transform_indices = @transform_1, window_bounds = array<i64: 8, 32>}, {pipeline_mode = #tpu.pipeline_mode<synchronous>, transform_indices = @transform_2, window_bounds = array<i64: 32, 8>}, {transform_indices = @transform_3, window_bounds = array<i64: 1, 1>}, {transform_indices = @transform_4, window_bounds = array<i64: 1, 8, 256>}]} {
    %c0 = arith.constant 0 : index
    %c0_0 = arith.constant 0 : index
    %c0_1 = arith.constant 0 : index
    %0 = vector.load %arg2[%c0, %c0_0, %c0_1] : memref<1x8x256xf32, #tpu.memory_space<vmem>>, vector<1x8x256xf32>
    %1 = vector.shape_cast %0 : vector<1x8x256xf32> to vector<8x256xf32>
    %c0_2 = arith.constant 0 : index
    %c0_3 = arith.constant 0 : index
    %2 = vector.load %arg3[%c0_2, %c0_3] : memref<8x32xf32, #tpu.memory_space<vmem>>, vector<8x32xf32>
    %c0_4 = arith.constant 0 : index
    %c0_5 = arith.constant 0 : index
    %3 = vector.load %arg4[%c0_4, %c0_5] : memref<32x8xf32, #tpu.memory_space<vmem>>, vector<32x8xf32>
    %c0_6 = arith.constant 0 : index
    %c0_7 = arith.constant 0 : index
    %4 = memref.load %arg5[%c0_6, %c0_7] : memref<1x1xf32, #tpu.memory_space<smem>>
    %cst = arith.constant dense<0.000000e+00> : vector<32x256xf32>
    %5 = tpu.matmul %3, %1, %cst {dimension_numbers = #tpu.dot_dimension_numbers<[1], [0], [0], [1], [0, 0, 1, 1], [], []>} : vector<32x8xf32>, vector<8x256xf32>, vector<32x256xf32> -> vector<32x256xf32>
    %6 = vector.broadcast %4 : f32 to vector<32x256xf32>
    %7 = arith.addf %5, %6 : vector<32x256xf32>
    %8 = arith.negf %7 : vector<32x256xf32>
    %9 = math.exp %8 : vector<32x256xf32>
    %cst_8 = arith.constant 1.000000e+00 : f32
    %10 = vector.broadcast %cst_8 : f32 to vector<32x256xf32>
    %11 = arith.addf %10, %9 : vector<32x256xf32>
    %12 = arith.divf %10, %11 : vector<32x256xf32>
    %13 = tpu.iota {dimensions = array<i32: 0>} : vector<32x256xi32>
    %cst_9 = arith.constant dense<0xFF800000> : vector<256xf32>
    %14 = vector.multi_reduction <maximumf>, %12, %cst_9 [0] : vector<32x256xf32> to vector<256xf32>
    %15 = vector.shape_cast %14 : vector<256xf32> to vector<1x256xf32>
    %16 = vector.broadcast %15 : vector<1x256xf32> to vector<32x256xf32>
    %17 = arith.cmpf oeq, %12, %16 : vector<32x256xf32>
    %c32_i32 = arith.constant 32 : i32
    %18 = vector.broadcast %c32_i32 : i32 to vector<32x256xi32>
    %19 = arith.select %17, %13, %18 : vector<32x256xi1>, vector<32x256xi32>
    %cst_10 = arith.constant dense<2147483647> : vector<256xi32>
    %20 = vector.multi_reduction <minsi>, %19, %cst_10 [0] : vector<32x256xi32> to vector<256xi32>
    %21 = vector.shape_cast %20 : vector<256xi32> to vector<1x256xi32>
    %22 = vector.broadcast %21 : vector<1x256xi32> to vector<32x256xi32>
    %23 = arith.cmpi eq, %13, %22 : vector<32x256xi32>
    %cst_11 = arith.constant 0xFF800000 : f32
    %24 = vector.broadcast %cst_11 : f32 to vector<32x256xf32>
    %25 = arith.select %23, %24, %12 : vector<32x256xi1>, vector<32x256xf32>
    %cst_12 = arith.constant dense<0xFF800000> : vector<256xf32>
    %26 = vector.multi_reduction <maximumf>, %25, %cst_12 [0] : vector<32x256xf32> to vector<256xf32>
    %27 = vector.shape_cast %26 : vector<256xf32> to vector<1x256xf32>
    %28 = vector.broadcast %27 : vector<1x256xf32> to vector<32x256xf32>
    %29 = arith.cmpf oeq, %25, %28 : vector<32x256xf32>
    %c32_i32_13 = arith.constant 32 : i32
    %30 = vector.broadcast %c32_i32_13 : i32 to vector<32x256xi32>
    %31 = arith.select %29, %13, %30 : vector<32x256xi1>, vector<32x256xi32>
    %cst_14 = arith.constant dense<2147483647> : vector<256xi32>
    %32 = vector.multi_reduction <minsi>, %31, %cst_14 [0] : vector<32x256xi32> to vector<256xi32>
    %33 = vector.shape_cast %32 : vector<256xi32> to vector<1x256xi32>
    %34 = vector.broadcast %33 : vector<1x256xi32> to vector<32x256xi32>
    %35 = arith.cmpi eq, %13, %34 : vector<32x256xi32>
    %cst_15 = arith.constant 0xFF800000 : f32
    %36 = vector.broadcast %cst_15 : f32 to vector<32x256xf32>
    %37 = arith.select %35, %36, %25 : vector<32x256xi1>, vector<32x256xf32>
    %cst_16 = arith.constant dense<0xFF800000> : vector<256xf32>
    %38 = vector.multi_reduction <maximumf>, %37, %cst_16 [0] : vector<32x256xf32> to vector<256xf32>
    %39 = vector.shape_cast %38 : vector<256xf32> to vector<1x256xf32>
    %40 = vector.broadcast %39 : vector<1x256xf32> to vector<32x256xf32>
    %41 = arith.cmpf oeq, %37, %40 : vector<32x256xf32>
    %c32_i32_17 = arith.constant 32 : i32
    %42 = vector.broadcast %c32_i32_17 : i32 to vector<32x256xi32>
    %43 = arith.select %41, %13, %42 : vector<32x256xi1>, vector<32x256xi32>
    %cst_18 = arith.constant dense<2147483647> : vector<256xi32>
    %44 = vector.multi_reduction <minsi>, %43, %cst_18 [0] : vector<32x256xi32> to vector<256xi32>
    %45 = vector.shape_cast %44 : vector<256xi32> to vector<1x256xi32>
    %46 = vector.broadcast %45 : vector<1x256xi32> to vector<32x256xi32>
    %47 = arith.cmpi eq, %13, %46 : vector<32x256xi32>
    %cst_19 = arith.constant 0xFF800000 : f32
    %48 = vector.broadcast %cst_19 : f32 to vector<32x256xf32>
    %49 = arith.select %47, %48, %37 : vector<32x256xi1>, vector<32x256xf32>
    %cst_20 = arith.constant dense<0xFF800000> : vector<256xf32>
    %50 = vector.multi_reduction <maximumf>, %49, %cst_20 [0] : vector<32x256xf32> to vector<256xf32>
    %51 = vector.shape_cast %50 : vector<256xf32> to vector<1x256xf32>
    %52 = vector.broadcast %51 : vector<1x256xf32> to vector<32x256xf32>
    %53 = arith.cmpf oge, %12, %52 : vector<32x256xf32>
    %54 = arith.extui %53 : vector<32x256xi1> to vector<32x256xi32>
    %55 = arith.sitofp %54 : vector<32x256xi32> to vector<32x256xf32>
    %56 = arith.mulf %12, %55 : vector<32x256xf32>
    %cst_21 = arith.constant dense<0.000000e+00> : vector<8x256xf32>
    %57 = tpu.matmul %2, %56, %cst_21 {dimension_numbers = #tpu.dot_dimension_numbers<[1], [0], [0], [1], [0, 0, 1, 1], [], []>} : vector<8x32xf32>, vector<32x256xf32>, vector<8x256xf32> -> vector<8x256xf32>
    %c0_22 = arith.constant 0 : index
    %c0_23 = arith.constant 0 : index
    %c0_24 = arith.constant 0 : index
    %58 = vector.load %arg6[%c0_22, %c0_23, %c0_24] : memref<1x8x256xf32, #tpu.memory_space<vmem>>, vector<1x8x256xf32>
    %59 = vector.shape_cast %58 : vector<1x8x256xf32> to vector<8x256xf32>
    %60 = vector.shape_cast %57 : vector<8x256xf32> to vector<1x8x256xf32>
    tpu.vector_store %arg6[%c0_22, %c0_23, %c0_24], %60 {strides = array<i32>} : memref<1x8x256xf32, #tpu.memory_space<vmem>>, vector<1x8x256xf32>,
    return
  }
  func.func @transform_0(%arg0: i32, %arg1: i32) -> (i32, i32, i32) {
    %c0_i32 = arith.constant 0 : i32
    %c0_i32_0 = arith.constant 0 : i32
    return %arg0, %c0_i32, %arg1 : i32, i32, i32
  }
  func.func @transform_1(%arg0: i32, %arg1: i32) -> (i32, i32) {
    %c0_i32 = arith.constant 0 : i32
    %c0_i32_0 = arith.constant 0 : i32
    %c0_i32_1 = arith.constant 0 : i32
    return %c0_i32, %c0_i32_0 : i32, i32
  }
  func.func @transform_2(%arg0: i32, %arg1: i32) -> (i32, i32) {
    %c0_i32 = arith.constant 0 : i32
    %c0_i32_0 = arith.constant 0 : i32
    %c0_i32_1 = arith.constant 0 : i32
    return %c0_i32, %c0_i32_0 : i32, i32
  }
  func.func @transform_3(%arg0: i32, %arg1: i32) -> (i32, i32) {
    %c0_i32 = arith.constant 0 : i32
    %c0_i32_0 = arith.constant 0 : i32
    %c0_i32_1 = arith.constant 0 : i32
    return %c0_i32, %c0_i32_0 : i32, i32
  }
  func.func @transform_4(%arg0: i32, %arg1: i32) -> (i32, i32, i32) {
    %c0_i32 = arith.constant 0 : i32
    %c0_i32_0 = arith.constant 0 : i32
    return %arg0, %c0_i32, %arg1 : i32, i32, i32
  }
}

</mosaic_0001>

<llo_original>
// kernel: tpu_custom_call.1
$region0: #{tpu_custom_call.1}
  #allocation0 [shape = 'u32[]', space=smem, size = 0x4, offset = 0x4, fixed_abs, tag = 'smem constant byte address 0x4 - core index']
  #allocation1 [shape = 'u32[144,128]{1,0:T(1,128)}', space=vmem, size = 0x12000, scoped, tag = 'internal scratch']
  #allocation2 [shape = 'f32[1,1]{1,0:T(1,128)S(6)}', space=smem, size = 0x200, scoped, tag = 'scoped memory for tpu_custom_call.1']
  %s0 = inlined_call_operand.vmem [shape: f32[2,8,256], index: 0, kind: input, shape index: {}]
  %s1 = inlined_call_operand.vmem [shape: f32[8,32], index: 1, kind: input, shape index: {}]
  %s2 = inlined_call_operand.vmem [shape: f32[32,8], index: 2, kind: input, shape index: {}]
  %s3 = inlined_call_operand.<no memory space> [shape: f32[1,1], index: 3, kind: input, shape index: {}]
  %s4 = inlined_call_operand.hbm [shape: f32[2,8,256], index: 4, kind: output, shape index: {}]
  %s5 = sld [smem:[#allocation0]]
  $region49: #{tpu_custom_call.1} parent=0
    _
  %s7 = ssub.s32 1, %s5
  %s8 = scalar_select 0, %s7, %s5
  %9 = sst [smem:[#allocation2]] %s3
  $region1: #{tpu_custom_call.1} parent=0
    #allocation3 [shape = 'u8[16384]{0}', space=vmem, size = 0x4000, scoped, tag = 'output window, operand 0']
    #allocation4 [shape = 's32[2]{0}', space=sflag, size = 0x8, scoped, tag = 'scoped memory for tpu_custom_call.1']
    %10 = vsyncpa [#allocation4], 0
    %s11 = scalar_lea.sflag [#allocation4], 1
    %12 = vsyncpa %s11, 0
    loop: start=0, step=1, limit=4
    $region2: #{tpu_custom_call.1} parent=1 // loop_pre_header
      _
    $region3: #{tpu_custom_call.1} parent=1 // loop_header
      %s14 = sphi 0, %s18
      %p15 = scmp.ge.s32.totalorder %s14, 4
      %s21 = sphi 0, %s33
      %s22 = sphi 0, %s29
      %s23 = sphi 0, %s21
      %s24 = sphi 0, %s22
      %s25 = sphi 0, %s23
      %s26 = sphi 0, %s24
      %s38 = sphi 0, %s40
      %s41 = sphi 0, %s38
      %s42 = sphi 0, %s41
      %s58 = sphi 0, %s42
      %s62 = sphi 0, %s62
      %s64 = sphi 0, %s62
      %s65 = sphi 0, %s64
      %s79 = sphi 0, %s65
      %s83 = sphi 0, %s83
      %s85 = sphi 0, %s83
      %s86 = sphi 0, %s85
      %s100 = sphi 0, %s86
      %s104 = sphi 0, %s104
      %s106 = sphi 0, %s104
      %s107 = sphi 0, %s106
      %s121 = sphi 0, %s107
      %s129 = sphi 0, %s131
      %s132 = sphi 0, %s129
      %s133 = sphi 0, %s132
      %s149 = sphi 0, %s133
    $region4: #{tpu_custom_call.1} parent=1 // loop_header_branch
      %17 = sbr.rel (%p15) target = $region8
    $region5: #{tpu_custom_call.1} parent=1 // loop_body
      %s19 = ssub.s32 %s14, 1
      %s20 = ssub.s32 %s14, 2
      %s27 = sadd.s32 1, %s22
      %p28 = scmp.ge.s32.totalorder %s27, 1
      %s29 = scalar_select %p28, 0, %s27
      %s30 = sadd.s32 1, %s21
      %s31 = scalar_select %p28, %s30, %s21
      %p32 = scmp.ge.s32.totalorder %s31, 2
      %s33 = scalar_select %p32, 0, %s31
      %s34 = ssub.s32 %s21, %s33
      %s35 = ssub.s32 %s22, %s29
      %s36 = sor.u32 %s34, %s35
      %p37 = scmp.eq.s32.totalorder %s36, 0
      %s39 = sadd.s32 %s38, 1
      %s40 = scalar_select %p37, %s38, %s39
      %p43 = pneg %p37
      %p44 = scmp.eq.s32.totalorder %s14, 1
      %p45 = por %p43, %p44
      %p46 = scmp.ne.s32.totalorder %s38, %s41
      %p47 = scmp.eq.s32.totalorder %s14, 0
      %p48 = por %p46, %p47
      %p49 = scmp.ne.s32.totalorder %s38, %s41
      %p50 = scmp.eq.s32.totalorder %s19, 1
      %p51 = por %p49, %p50
      %p52 = scmp.ne.s32.totalorder %s41, %s42
      %p53 = scmp.eq.s32.totalorder %s19, 0
      %p54 = por %p52, %p53
      %p55 = scmp.ne.s32.totalorder %s41, %s42
      %p56 = scmp.eq.s32.totalorder %s20, 1
      %p57 = por %p55, %p56
      %p59 = scmp.ne.s32.totalorder %s42, %s58
      %p60 = scmp.eq.s32.totalorder %s20, 0
      %p61 = por %p59, %p60
      %s63 = sadd.s32 %s62, 1
      %p66 = scmp.eq.s32.totalorder %s14, 1
      %p67 = scmp.ne.s32.totalorder %s62, %s64
      %p68 = scmp.eq.s32.totalorder %s14, 0
      %p69 = por %p67, %p68
      %p70 = scmp.ne.s32.totalorder %s62, %s64
      %p71 = scmp.eq.s32.totalorder %s19, 1
      %p72 = por %p70, %p71
      %p73 = scmp.ne.s32.totalorder %s64, %s65
      %p74 = scmp.eq.s32.totalorder %s19, 0
      %p75 = por %p73, %p74
      %p76 = scmp.ne.s32.totalorder %s64, %s65
      %p77 = scmp.eq.s32.totalorder %s20, 1
      %p78 = por %p76, %p77
      %p80 = scmp.ne.s32.totalorder %s65, %s79
      %p81 = scmp.eq.s32.totalorder %s20, 0
      %p82 = por %p80, %p81
      %s84 = sadd.s32 %s83, 1
      %p87 = scmp.eq.s32.totalorder %s14, 1
      %p88 = scmp.ne.s32.totalorder %s83, %s85
      %p89 = scmp.eq.s32.totalorder %s14, 0
      %p90 = por %p88, %p89
      %p91 = scmp.ne.s32.totalorder %s83, %s85
      %p92 = scmp.eq.s32.totalorder %s19, 1
      %p93 = por %p91, %p92
      %p94 = scmp.ne.s32.totalorder %s85, %s86
      %p95 = scmp.eq.s32.totalorder %s19, 0
      %p96 = por %p94, %p95
      %p97 = scmp.ne.s32.totalorder %s85, %s86
      %p98 = scmp.eq.s32.totalorder %s20, 1
      %p99 = por %p97, %p98
      %p101 = scmp.ne.s32.totalorder %s86, %s100
      %p102 = scmp.eq.s32.totalorder %s20, 0
      %p103 = por %p101, %p102
      %s105 = sadd.s32 %s104, 1
      %p108 = scmp.eq.s32.totalorder %s14, 1
      %p109 = scmp.ne.s32.totalorder %s104, %s106
      %p110 = scmp.eq.s32.totalorder %s14, 0
      %p111 = por %p109, %p110
      %p112 = scmp.ne.s32.totalorder %s104, %s106
      %p113 = scmp.eq.s32.totalorder %s19, 1
      %p114 = por %p112, %p113
      %p115 = scmp.ne.s32.totalorder %s106, %s107
      %p116 = scmp.eq.s32.totalorder %s19, 0
      %p117 = por %p115, %p116
      %p118 = scmp.ne.s32.totalorder %s106, %s107
      %p119 = scmp.eq.s32.totalorder %s20, 1
      %p120 = por %p118, %p119
      %p122 = scmp.ne.s32.totalorder %s107, %s121
      %p123 = scmp.eq.s32.totalorder %s20, 0
      %p124 = por %p122, %p123
      %s125 = ssub.s32 %s21, %s33
      %s126 = ssub.s32 %s22, %s29
      %s127 = sor.u32 %s125, %s126
      %p128 = scmp.eq.s32.totalorder %s127, 0
      %s130 = sadd.s32 %s129, 1
      %s131 = scalar_select %p128, %s129, %s130
      %p134 = pneg %p128
      %p135 = scmp.eq.s32.totalorder %s14, 1
      %p136 = por %p134, %p135
      %p137 = scmp.ne.s32.totalorder %s129, %s132
      %p138 = scmp.eq.s32.totalorder %s14, 0
      %p139 = por %p137, %p138
      %p140 = scmp.ne.s32.totalorder %s129, %s132
      %p141 = scmp.eq.s32.totalorder %s19, 1
      %p142 = por %p140, %p141
      %p143 = scmp.ne.s32.totalorder %s132, %s133
      %p144 = scmp.eq.s32.totalorder %s19, 0
      %p145 = por %p143, %p144
      %p146 = scmp.ne.s32.totalorder %s132, %s133
      %p147 = scmp.eq.s32.totalorder %s20, 1
      %p148 = por %p146, %p147
      %p150 = scmp.ne.s32.totalorder %s133, %s149
      %p151 = scmp.eq.s32.totalorder %s20, 0
      %p152 = por %p150, %p151
      %p153 = scmp.le.s32.totalorder 1, %s14
      %p154 = scmp.lt.s32.totalorder %s14, 3
      %p155 = pnand %p153, %p154
      %p156 = pneg %p155
      // Predicated region
      $region9: #{tpu_custom_call.1} parent=5 // pred_check
        _
      $region10: #{tpu_custom_call.1} parent=5 // pred_check_branch
        %158 = sbr.rel (%p155) target = $region12
      $region11: #{tpu_custom_call.1} parent=5 // pred_region
        %s159 = ssub.s32 %s14, 1
        // Predicated region
        $region13: #{tpu_custom_call.1} parent=11 // pred_check
          %p160 = pneg %p75
        $region14: #{tpu_custom_call.1} parent=11 // pred_check_branch
          %162 = sbr.rel (%p160) target = $region16
        $region15: #{tpu_custom_call.1} parent=11 // pred_region
          _
        $region16: #{tpu_custom_call.1} parent=11 // pred_fallthru
          _
        // Predicated region
        $region17: #{tpu_custom_call.1} parent=11 // pred_check
          %p163 = pneg %p96
        $region18: #{tpu_custom_call.1} parent=11 // pred_check_branch
          %165 = sbr.rel (%p163) target = $region20
        $region19: #{tpu_custom_call.1} parent=11 // pred_region
          _
        $region20: #{tpu_custom_call.1} parent=11 // pred_fallthru
          _
        // Predicated region
        $region21: #{tpu_custom_call.1} parent=11 // pred_check
          %p166 = pneg %p117
        $region22: #{tpu_custom_call.1} parent=11 // pred_check_branch
          %168 = sbr.rel (%p166) target = $region24
        $region23: #{tpu_custom_call.1} parent=11 // pred_region
          _
        $region24: #{tpu_custom_call.1} parent=11 // pred_fallthru
          _
      $region12: #{tpu_custom_call.1} parent=5 // pred_fallthru
        _
      %p169 = scmp.lt.s32.totalorder %s14, 2
      // Predicated region
      $region25: #{tpu_custom_call.1} parent=5 // pred_check
        %p170 = pneg %p169
      $region26: #{tpu_custom_call.1} parent=5 // pred_check_branch
        %172 = sbr.rel (%p170) target = $region28
      $region27: #{tpu_custom_call.1} parent=5 // pred_region
        // Predicated region
        $region29: #{tpu_custom_call.1} parent=27 // pred_check
          %p173 = pneg %p48
        $region30: #{tpu_custom_call.1} parent=27 // pred_check_branch
          %175 = sbr.rel (%p173) target = $region32
        $region31: #{tpu_custom_call.1} parent=27 // pred_region
          %s176 = smul.u32 2, %s22
          %p177 = scmp.lt.s32.totalorder %s21, 1
          %s178 = scalar_select %p177, %s21, 1
          %p179 = scmp.lt.s32.totalorder %s176, 1
          %s180 = scalar_select %p179, %s176, 1
          %s181 = smul.addr %s178, 2
          %s182 = sadd.s32 %s180, %s181
          %s183 = smul.addr %s182, 8
          %s184 = scalar_lea.vmem %s0, %s183
          %s185 = smul.u32 2, %s22
        $region32: #{tpu_custom_call.1} parent=27 // pred_fallthru
          _
      $region28: #{tpu_custom_call.1} parent=5 // pred_fallthru
        _
      %p186 = scmp.le.s32.totalorder 1, %s14
      %p187 = scmp.lt.s32.totalorder %s14, 3
      %p188 = pnand %p186, %p187
      %p189 = pneg %p188
      // Predicated region
      $region33: #{tpu_custom_call.1} parent=5 // pred_check
        _
      $region34: #{tpu_custom_call.1} parent=5 // pred_check_branch
        %191 = sbr.rel (%p188) target = $region36
      $region35: #{tpu_custom_call.1} parent=5 // pred_region
        %s192 = ssub.s32 %s14, 1
        %s193 = smul.u32 2, %s24
        %p194 = scmp.lt.s32.totalorder %s23, 1
        %s195 = scalar_select %p194, %s23, 1
        %p196 = scmp.lt.s32.totalorder %s193, 1
        %s197 = scalar_select %p196, %s193, 1
        %s198 = smul.addr %s195, 2
        %s199 = sadd.s32 %s197, %s198
        %s200 = smul.addr %s199, 8
        %s201 = scalar_lea.vmem %s0, %s200
        %p202 = pneg %p54
        %p203 = pneg %p51
        %p204 = pneg %p75
        %p205 = pneg %p72
        %p206 = pneg %p96
        %p207 = pneg %p93
        %p208 = pneg %p117
        %p209 = pneg %p114
        %p210 = pneg %p145
        %p211 = pneg %p142
        %s212 = sand.u32 %s132, 1
        %s213 = scalar_lea.sflag [#allocation4], %s212
        %s214 = sand.u32 %s132, 1
        %s215 = smul.addr %s214, 16
        %s216 = scalar_lea.vmem [#allocation3], %s215
        %s217 = smul.u32 2, %s24
        %p218 = scmp.lt.s32.totalorder %s23, 1
        %s219 = scalar_select %p218, %s23, 1
        %p220 = scmp.lt.s32.totalorder %s217, 1
        %s221 = scalar_select %p220, %s217, 1
        %s222 = smul.addr %s219, 2
        %s223 = sadd.s32 %s221, %s222
        %s224 = smul.addr %s223, 8
        %s225 = scalar_lea.vmem %s0, %s224
        %s226 = smul.u32 2, %s24
        %s227 = smul.u32 2, %s24
        %v228 = vld [vmem:[%s225] sm:$0xff]
        %v229 = vld [vmem:[%s225 + $0x8] sm:$0xff]
        %v230 = vld [vmem:[%s1] sm:$0xff]
        %v231 = vld [vmem:[%s2] sm:$0xff]
        %v232 = vld [vmem:[%s2 + $0x8] sm:$0xff]
        %v233 = vld [vmem:[%s2 + $0x10] sm:$0xff]
        %v234 = vld [vmem:[%s2 + $0x18] sm:$0xff]
        %s235 = sld [smem:[#allocation2]]
        %v236 = vstv %s235
        %vm237 = vcmask 64512
        %v239 = vsel %vm237, %v231, 0
        %v242 = vsel %vm237, %v232, 0
        %v245 = vsel %vm237, %v233, 0
        %v248 = vsel %vm237, %v234, 0
        %250 = vmatprep.subr.mxu0 %v229
        %251 = vmatpush1.msra.mxu0 %v228
        %252 = vmatprep.subr.mxu0 0.0
        %253 = vmatpush1.msra.mxu0 0.0
        %254 = vmatprep.subr.mxu0 0.0
        %255 = vmatpush1.msra.mxu0 0.0
        %256 = vmatprep.subr.mxu0 0.0
        %257 = vmatpush1.msra.mxu0 0.0
        %258 = vmatprep.subr.mxu0 0.0
        %259 = vmatpush1.msra.mxu0 0.0
        %260 = vmatprep.subr.mxu0 0.0
        %261 = vmatpush1.msra.mxu0 0.0
        %262 = vmatprep.subr.mxu0 0.0
        %263 = vmatpush1.msra.mxu0 0.0
        %264 = vmatprep.subr.mxu0 0.0
        %265 = vmatpush1.msra.mxu0 0.0
        %266 = vmatprep.subr.mxu0 0.0
        %267 = vmatpush1.msra.mxu0 0.0
        %268 = vmatprep.subr.mxu0 0.0
        %269 = vmatpush1.msra.mxu0 0.0
        %270 = vmatprep.subr.mxu0 0.0
        %271 = vmatpush1.msra.mxu0 0.0
        %272 = vmatprep.subr.mxu0 0.0
        %273 = vmatpush1.msra.mxu0 0.0
        %274 = vmatprep.subr.mxu0 0.0
        %275 = vmatpush1.msra.mxu0 0.0
        %276 = vmatprep.subr.mxu0 0.0
        %277 = vmatpush1.msra.mxu0 0.0
        %278 = vmatprep.subr.mxu0 0.0
        %279 = vmatpush1.msra.mxu0 0.0
        %280 = vmatprep.subr.mxu0 0.0
        %281 = vmatpush1.msra.mxu0 0.0
        %282 = vmatprep.subr.mxu0 0.0
        %283 = vmatpush1.msra.mxu0 0.0
        %284 = vmatprep.subr.mxu0 0.0
        %285 = vmatpush1.msra.mxu0 0.0
        %286 = vmatprep.subr.mxu0 0.0
        %287 = vmatpush1.msra.mxu0 0.0
        %288 = vmatprep.subr.mxu0 0.0
        %289 = vmatpush1.msra.mxu0 0.0
        %290 = vmatprep.subr.mxu0 0.0
        %291 = vmatpush1.msra.mxu0 0.0
        %292 = vmatprep.subr.mxu0 0.0
        %293 = vmatpush1.msra.mxu0 0.0
        %294 = vmatprep.subr.mxu0 0.0
        %295 = vmatpush1.msra.mxu0 0.0
        %296 = vmatprep.subr.mxu0 0.0
        %297 = vmatpush1.msra.mxu0 0.0
        %298 = vmatprep.subr.mxu0 0.0
        %299 = vmatpush1.msra.mxu0 0.0
        %300 = vmatprep.subr.mxu0 0.0
        %301 = vmatpush1.msra.mxu0 0.0
        %302 = vmatprep.subr.mxu0 0.0
        %303 = vmatpush1.msra.mxu0 0.0
        %304 = vmatprep.subr.mxu0 0.0
        %305 = vmatpush1.msra.mxu0 0.0
        %306 = vmatprep.subr.mxu0 0.0
        %307 = vmatpush1.msra.mxu0 0.0
        %308 = vmatprep.subr.mxu0 0.0
        %309 = vmatpush1.msra.mxu0 0.0
        %310 = vmatprep.subr.mxu0 0.0
        %311 = vmatpush1.msra.mxu0 0.0
        %312 = vmatprep.subr.mxu0 0.0
        %313 = vmatpush1.msra.mxu0 0.0
        %314 = vmatprep.mubr.f32.mxu0 0.0
        %315 = vmatmul.mubr.f32.gmra.mrb[0].mxu0 %v239
        %v316 = vpop.f32.mrb[0].mxu0
        %v317 = vadd.f32 %v236, %v316
        %v318 = vpop.f32.mrb[0].mxu0
        %v319 = vadd.f32 %v236, %v318
        %320 = vmatprep.mubr.f32.mxu0 0.0
        %321 = vmatmul.mubr.f32.gmra.mrb[0].mxu0 %v242
        %v322 = vpop.f32.mrb[0].mxu0
        %v323 = vadd.f32 %v236, %v322
        %v324 = vpop.f32.mrb[0].mxu0
        %v325 = vadd.f32 %v236, %v324
        %326 = vmatprep.mubr.f32.mxu0 0.0
        %327 = vmatmul.mubr.f32.gmra.mrb[0].mxu0 %v245
        %v328 = vpop.f32.mrb[0].mxu0
        %v329 = vadd.f32 %v236, %v328
        %v330 = vpop.f32.mrb[0].mxu0
        %v331 = vadd.f32 %v236, %v330
        %332 = vmatprep.mubr.f32.mxu0 0.0
        %333 = vmatmul.mubr.f32.gmra.mrb[0].mxu0 %v248
        %v334 = vpop.f32.mrb[0].mxu0
        %v335 = vadd.f32 %v236, %v334
        %v336 = vpop.f32.mrb[0].mxu0
        %v337 = vadd.f32 %v236, %v336
        %338 = vdwg.mxu0
        %v339 = vxor.u32 %v317, 2147483648
        %v340 = vxor.u32 %v319, 2147483648
        %v341 = vxor.u32 %v323, 2147483648
        %v342 = vxor.u32 %v325, 2147483648
        %v343 = vxor.u32 %v329, 2147483648
        %v344 = vxor.u32 %v331, 2147483648
        %v345 = vxor.u32 %v335, 2147483648
        %v346 = vxor.u32 %v337, 2147483648
        %v347 = vmul.f32 %v339, 1.442695
        %v348 = vpow.pop %v347
        %v349 = vmul.f32 %v340, 1.442695
        %v350 = vpow.pop %v349
        %v351 = vmul.f32 %v341, 1.442695
        %v352 = vpow.pop %v351
        %v353 = vmul.f32 %v342, 1.442695
        %v354 = vpow.pop %v353
        %v355 = vmul.f32 %v343, 1.442695
        %v356 = vpow.pop %v355
        %v357 = vmul.f32 %v344, 1.442695
        %v358 = vpow.pop %v357
        %v359 = vmul.f32 %v345, 1.442695
        %v360 = vpow.pop %v359
        %v361 = vmul.f32 %v346, 1.442695
        %v362 = vpow.pop %v361
        %v363 = vadd.f32 %v348, 1.0
        %v364 = vadd.f32 %v350, 1.0
        %v365 = vadd.f32 %v352, 1.0
        %v366 = vadd.f32 %v354, 1.0
        %v367 = vadd.f32 %v356, 1.0
        %v368 = vadd.f32 %v358, 1.0
        %v369 = vadd.f32 %v360, 1.0
        %v370 = vadd.f32 %v362, 1.0
        %v371 = vrcp.pop %v363
        %v372 = vmul.f32 1.0, %v371
        %v373 = vrcp.pop %v364
        %v374 = vmul.f32 1.0, %v373
        %v375 = vrcp.pop %v365
        %v376 = vmul.f32 1.0, %v375
        %v377 = vrcp.pop %v366
        %v378 = vmul.f32 1.0, %v377
        %v379 = vrcp.pop %v367
        %v380 = vmul.f32 1.0, %v379
        %v381 = vrcp.pop %v368
        %v382 = vmul.f32 1.0, %v381
        %v383 = vrcp.pop %v369
        %v384 = vmul.f32 1.0, %v383
        %v385 = vrcp.pop %v370
        %v386 = vmul.f32 1.0, %v385
        %v387 = vlaneseq
        %v388 = vshrl.u32 %v387, 7
        %v389 = vadd.s32 %v388, 8
        %v390 = vadd.s32 %v388, 16
        %v391 = vadd.s32 %v388, 24
        %v392 = vmax.f32 %v372, %v380
        %v393 = vmax.f32 %v376, %v384
        %v394 = vmax.f32 %v392, %v393
        %v395 = vrot.slane %v394, 4
        %v396 = vmax.f32 %v394, %v395
        %v397 = vrot.slane %v396, 2
        %v398 = vmax.f32 %v396, %v397
        %v399 = vrot.slane %v398, 1
        %v400 = vmax.f32 %v398, %v399
        %v401 = vmax.f32 %v374, %v382
        %v402 = vmax.f32 %v378, %v386
        %v403 = vmax.f32 %v401, %v402
        %v404 = vrot.slane %v403, 4
        %v405 = vmax.f32 %v403, %v404
        %v406 = vrot.slane %v405, 2
        %v407 = vmax.f32 %v405, %v406
        %v408 = vrot.slane %v407, 1
        %v409 = vmax.f32 %v407, %v408
        %vm410 = vcmp.eq.f32.partialorder %v372, %v400
        %vm411 = vcmp.eq.f32.partialorder %v374, %v409
        %vm412 = vcmp.eq.f32.partialorder %v376, %v400
        %vm413 = vcmp.eq.f32.partialorder %v378, %v409
        %vm414 = vcmp.eq.f32.partialorder %v380, %v400
        %vm415 = vcmp.eq.f32.partialorder %v382, %v409
        %vm416 = vcmp.eq.f32.partialorder %v384, %v400
        %vm417 = vcmp.eq.f32.partialorder %v386, %v409
        %v418 = vsel %vm410, %v388, 32
        %v419 = vsel %vm411, %v388, 32
        %v420 = vsel %vm412, %v389, 32
        %v421 = vsel %vm413, %v389, 32
        %v422 = vsel %vm414, %v390, 32
        %v423 = vsel %vm415, %v390, 32
        %v424 = vsel %vm416, %v391, 32
        %v425 = vsel %vm417, %v391, 32
        %vm426 = vcmp.lt.s32.totalorder %v418, %v422
        %v427 = vsel %vm426, %v418, %v422
        %vm428 = vcmp.lt.s32.totalorder %v420, %v424
        %v429 = vsel %vm428, %v420, %v424
        %vm430 = vcmp.lt.s32.totalorder %v427, %v429
        %v431 = vsel %vm430, %v427, %v429
        %v432 = vrot.slane %v431, 4
        %vm433 = vcmp.lt.s32.totalorder %v431, %v432
        %v434 = vsel %vm433, %v431, %v432
        %v435 = vrot.slane %v434, 2
        %vm436 = vcmp.lt.s32.totalorder %v434, %v435
        %v437 = vsel %vm436, %v434, %v435
        %v438 = vrot.slane %v437, 1
        %vm439 = vcmp.lt.s32.totalorder %v437, %v438
        %v440 = vsel %vm439, %v437, %v438
        %vm441 = vcmp.lt.s32.totalorder %v419, %v423
        %v442 = vsel %vm441, %v419, %v423
        %vm443 = vcmp.lt.s32.totalorder %v421, %v425
        %v444 = vsel %vm443, %v421, %v425
        %vm445 = vcmp.lt.s32.totalorder %v442, %v444
        %v446 = vsel %vm445, %v442, %v444
        %v447 = vrot.slane %v446, 4
        %vm448 = vcmp.lt.s32.totalorder %v446, %v447
        %v449 = vsel %vm448, %v446, %v447
        %v450 = vrot.slane %v449, 2
        %vm451 = vcmp.lt.s32.totalorder %v449, %v450
        %v452 = vsel %vm451, %v449, %v450
        %v453 = vrot.slane %v452, 1
        %vm454 = vcmp.lt.s32.totalorder %v452, %v453
        %v455 = vsel %vm454, %v452, %v453
        %vm456 = vcmp.eq.s32.totalorder %v388, %v440
        %vm457 = vcmp.eq.s32.totalorder %v388, %v455
        %vm458 = vcmp.eq.s32.totalorder %v389, %v440
        %vm459 = vcmp.eq.s32.totalorder %v389, %v455
        %vm460 = vcmp.eq.s32.totalorder %v390, %v440
        %vm461 = vcmp.eq.s32.totalorder %v390, %v455
        %vm462 = vcmp.eq.s32.totalorder %v391, %v440
        %vm463 = vcmp.eq.s32.totalorder %v391, %v455
        %v464 = vsel %vm456, -inf, %v372
        %v465 = vsel %vm457, -inf, %v374
        %v466 = vsel %vm458, -inf, %v376
        %v467 = vsel %vm459, -inf, %v378
        %v468 = vsel %vm460, -inf, %v380
        %v469 = vsel %vm461, -inf, %v382
        %v470 = vsel %vm462, -inf, %v384
        %v471 = vsel %vm463, -inf, %v386
        %v472 = vmax.f32 %v464, %v468
        %v473 = vmax.f32 %v466, %v470
        %v474 = vmax.f32 %v472, %v473
        %v475 = vrot.slane %v474, 4
        %v476 = vmax.f32 %v474, %v475
        %v477 = vrot.slane %v476, 2
        %v478 = vmax.f32 %v476, %v477
        %v479 = vrot.slane %v478, 1
        %v480 = vmax.f32 %v478, %v479
        %v481 = vmax.f32 %v465, %v469
        %v482 = vmax.f32 %v467, %v471
        %v483 = vmax.f32 %v481, %v482
        %v484 = vrot.slane %v483, 4
        %v485 = vmax.f32 %v483, %v484
        %v486 = vrot.slane %v485, 2
        %v487 = vmax.f32 %v485, %v486
        %v488 = vrot.slane %v487, 1
        %v489 = vmax.f32 %v487, %v488
        %vm490 = vcmp.eq.f32.partialorder %v464, %v480
        %vm491 = vcmp.eq.f32.partialorder %v465, %v489
        %vm492 = vcmp.eq.f32.partialorder %v466, %v480
        %vm493 = vcmp.eq.f32.partialorder %v467, %v489
        %vm494 = vcmp.eq.f32.partialorder %v468, %v480
        %vm495 = vcmp.eq.f32.partialorder %v469, %v489
        %vm496 = vcmp.eq.f32.partialorder %v470, %v480
        %vm497 = vcmp.eq.f32.partialorder %v471, %v489
        %v498 = vsel %vm490, %v388, 32
        %v499 = vsel %vm491, %v388, 32
        %v500 = vsel %vm492, %v389, 32
        %v501 = vsel %vm493, %v389, 32
        %v502 = vsel %vm494, %v390, 32
        %v503 = vsel %vm495, %v390, 32
        %v504 = vsel %vm496, %v391, 32
        %v505 = vsel %vm497, %v391, 32
        %vm506 = vcmp.lt.s32.totalorder %v498, %v502
        %v507 = vsel %vm506, %v498, %v502
        %vm508 = vcmp.lt.s32.totalorder %v500, %v504
        %v509 = vsel %vm508, %v500, %v504
        %vm510 = vcmp.lt.s32.totalorder %v507, %v509
        %v511 = vsel %vm510, %v507, %v509
        %v512 = vrot.slane %v511, 4
        %vm513 = vcmp.lt.s32.totalorder %v511, %v512
        %v514 = vsel %vm513, %v511, %v512
        %v515 = vrot.slane %v514, 2
        %vm516 = vcmp.lt.s32.totalorder %v514, %v515
        %v517 = vsel %vm516, %v514, %v515
        %v518 = vrot.slane %v517, 1
        %vm519 = vcmp.lt.s32.totalorder %v517, %v518
        %v520 = vsel %vm519, %v517, %v518
        %vm521 = vcmp.lt.s32.totalorder %v499, %v503
        %v522 = vsel %vm521, %v499, %v503
        %vm523 = vcmp.lt.s32.totalorder %v501, %v505
        %v524 = vsel %vm523, %v501, %v505
        %vm525 = vcmp.lt.s32.totalorder %v522, %v524
        %v526 = vsel %vm525, %v522, %v524
        %v527 = vrot.slane %v526, 4
        %vm528 = vcmp.lt.s32.totalorder %v526, %v527
        %v529 = vsel %vm528, %v526, %v527
        %v530 = vrot.slane %v529, 2
        %vm531 = vcmp.lt.s32.totalorder %v529, %v530
        %v532 = vsel %vm531, %v529, %v530
        %v533 = vrot.slane %v532, 1
        %vm534 = vcmp.lt.s32.totalorder %v532, %v533
        %v535 = vsel %vm534, %v532, %v533
        %vm536 = vcmp.eq.s32.totalorder %v388, %v520
        %vm537 = vcmp.eq.s32.totalorder %v388, %v535
        %vm538 = vcmp.eq.s32.totalorder %v389, %v520
        %vm539 = vcmp.eq.s32.totalorder %v389, %v535
        %vm540 = vcmp.eq.s32.totalorder %v390, %v520
        %vm541 = vcmp.eq.s32.totalorder %v390, %v535
        %vm542 = vcmp.eq.s32.totalorder %v391, %v520
        %vm543 = vcmp.eq.s32.totalorder %v391, %v535
        %v544 = vsel %vm536, -inf, %v464
        %v545 = vsel %vm537, -inf, %v465
        %v546 = vsel %vm538, -inf, %v466
        %v547 = vsel %vm539, -inf, %v467
        %v548 = vsel %vm540, -inf, %v468
        %v549 = vsel %vm541, -inf, %v469
        %v550 = vsel %vm542, -inf, %v470
        %v551 = vsel %vm543, -inf, %v471
        %v552 = vmax.f32 %v544, %v548
        %v553 = vmax.f32 %v546, %v550
        %v554 = vmax.f32 %v552, %v553
        %v555 = vrot.slane %v554, 4
        %v556 = vmax.f32 %v554, %v555
        %v557 = vrot.slane %v556, 2
        %v558 = vmax.f32 %v556, %v557
        %v559 = vrot.slane %v558, 1
        %v560 = vmax.f32 %v558, %v559
        %v561 = vmax.f32 %v545, %v549
        %v562 = vmax.f32 %v547, %v551
        %v563 = vmax.f32 %v561, %v562
        %v564 = vrot.slane %v563, 4
        %v565 = vmax.f32 %v563, %v564
        %v566 = vrot.slane %v565, 2
        %v567 = vmax.f32 %v565, %v566
        %v568 = vrot.slane %v567, 1
        %v569 = vmax.f32 %v567, %v568
        %vm570 = vcmp.eq.f32.partialorder %v544, %v560
        %vm571 = vcmp.eq.f32.partialorder %v545, %v569
        %vm572 = vcmp.eq.f32.partialorder %v546, %v560
        %vm573 = vcmp.eq.f32.partialorder %v547, %v569
        %vm574 = vcmp.eq.f32.partialorder %v548, %v560
        %vm575 = vcmp.eq.f32.partialorder %v549, %v569
        %vm576 = vcmp.eq.f32.partialorder %v550, %v560
        %vm577 = vcmp.eq.f32.partialorder %v551, %v569
        %v578 = vsel %vm570, %v388, 32
        %v579 = vsel %vm571, %v388, 32
        %v580 = vsel %vm572, %v389, 32
        %v581 = vsel %vm573, %v389, 32
        %v582 = vsel %vm574, %v390, 32
        %v583 = vsel %vm575, %v390, 32
        %v584 = vsel %vm576, %v391, 32
        %v585 = vsel %vm577, %v391, 32
        %vm586 = vcmp.lt.s32.totalorder %v578, %v582
        %v587 = vsel %vm586, %v578, %v582
        %vm588 = vcmp.lt.s32.totalorder %v580, %v584
        %v589 = vsel %vm588, %v580, %v584
        %vm590 = vcmp.lt.s32.totalorder %v587, %v589
        %v591 = vsel %vm590, %v587, %v589
        %v592 = vrot.slane %v591, 4
        %vm593 = vcmp.lt.s32.totalorder %v591, %v592
        %v594 = vsel %vm593, %v591, %v592
        %v595 = vrot.slane %v594, 2
        %vm596 = vcmp.lt.s32.totalorder %v594, %v595
        %v597 = vsel %vm596, %v594, %v595
        %v598 = vrot.slane %v597, 1
        %vm599 = vcmp.lt.s32.totalorder %v597, %v598
        %v600 = vsel %vm599, %v597, %v598
        %vm601 = vcmp.lt.s32.totalorder %v579, %v583
        %v602 = vsel %vm601, %v579, %v583
        %vm603 = vcmp.lt.s32.totalorder %v581, %v585
        %v604 = vsel %vm603, %v581, %v585
        %vm605 = vcmp.lt.s32.totalorder %v602, %v604
        %v606 = vsel %vm605, %v602, %v604
        %v607 = vrot.slane %v606, 4
        %vm608 = vcmp.lt.s32.totalorder %v606, %v607
        %v609 = vsel %vm608, %v606, %v607
        %v610 = vrot.slane %v609, 2
        %vm611 = vcmp.lt.s32.totalorder %v609, %v610
        %v612 = vsel %vm611, %v609, %v610
        %v613 = vrot.slane %v612, 1
        %vm614 = vcmp.lt.s32.totalorder %v612, %v613
        %v615 = vsel %vm614, %v612, %v613
        %vm616 = vcmp.eq.s32.totalorder %v388, %v600
        %vm617 = vcmp.eq.s32.totalorder %v388, %v615
        %vm618 = vcmp.eq.s32.totalorder %v389, %v600
        %vm619 = vcmp.eq.s32.totalorder %v389, %v615
        %vm620 = vcmp.eq.s32.totalorder %v390, %v600
        %vm621 = vcmp.eq.s32.totalorder %v390, %v615
        %vm622 = vcmp.eq.s32.totalorder %v391, %v600
        %vm623 = vcmp.eq.s32.totalorder %v391, %v615
        %v624 = vsel %vm616, -inf, %v544
        %v625 = vsel %vm617, -inf, %v545
        %v626 = vsel %vm618, -inf, %v546
        %v627 = vsel %vm619, -inf, %v547
        %v628 = vsel %vm620, -inf, %v548
        %v629 = vsel %vm621, -inf, %v549
        %v630 = vsel %vm622, -inf, %v550
        %v631 = vsel %vm623, -inf, %v551
        %v632 = vmax.f32 %v624, %v628
        %v633 = vmax.f32 %v626, %v630
        %v634 = vmax.f32 %v632, %v633
        %v635 = vrot.slane %v634, 4
        %v636 = vmax.f32 %v634, %v635
        %v637 = vrot.slane %v636, 2
        %v638 = vmax.f32 %v636, %v637
        %v639 = vrot.slane %v638, 1
        %v640 = vmax.f32 %v638, %v639
        %v641 = vmax.f32 %v625, %v629
        %v642 = vmax.f32 %v627, %v631
        %v643 = vmax.f32 %v641, %v642
        %v644 = vrot.slane %v643, 4
        %v645 = vmax.f32 %v643, %v644
        %v646 = vrot.slane %v645, 2
        %v647 = vmax.f32 %v645, %v646
        %v648 = vrot.slane %v647, 1
        %v649 = vmax.f32 %v647, %v648
        %vm650 = vcmp.ge.f32.partialorder %v372, %v640
        %vm651 = vcmp.ge.f32.partialorder %v374, %v649
        %vm652 = vcmp.ge.f32.partialorder %v376, %v640
        %vm653 = vcmp.ge.f32.partialorder %v378, %v649
        %vm654 = vcmp.ge.f32.partialorder %v380, %v640
        %vm655 = vcmp.ge.f32.partialorder %v382, %v649
        %vm656 = vcmp.ge.f32.partialorder %v384, %v640
        %vm657 = vcmp.ge.f32.partialorder %v386, %v649
        %v658 = vsel %vm650, 1, 0
        %v659 = vsel %vm651, 1, 0
        %v660 = vsel %vm652, 1, 0
        %v661 = vsel %vm653, 1, 0
        %v662 = vsel %vm654, 1, 0
        %v663 = vsel %vm655, 1, 0
        %v664 = vsel %vm656, 1, 0
        %v665 = vsel %vm657, 1, 0
        %v666 = vcvt.s32.f32 %v658
        %v667 = vcvt.s32.f32 %v659
        %v668 = vcvt.s32.f32 %v660
        %v669 = vcvt.s32.f32 %v661
        %v670 = vcvt.s32.f32 %v662
        %v671 = vcvt.s32.f32 %v663
        %v672 = vcvt.s32.f32 %v664
        %v673 = vcvt.s32.f32 %v665
        %v674 = vmul.f32 %v372, %v666
        %v675 = vmul.f32 %v374, %v667
        %v676 = vmul.f32 %v376, %v668
        %v677 = vmul.f32 %v378, %v669
        %v678 = vmul.f32 %v380, %v670
        %v679 = vmul.f32 %v382, %v671
        %v680 = vmul.f32 %v384, %v672
        %v681 = vmul.f32 %v386, %v673
        %vm682 = vcmask 261120
        %v684 = vsel %vm682, %v230, 0
        %686 = vmatprep.subr.mxu0 %v675
        %687 = vmatpush1.msra.mxu0 %v674
        %688 = vmatprep.subr.mxu0 %v677
        %689 = vmatpush1.msra.mxu0 %v676
        %690 = vmatprep.subr.mxu0 %v679
        %691 = vmatpush1.msra.mxu0 %v678
        %692 = vmatprep.subr.mxu0 %v681
        %693 = vmatpush1.msra.mxu0 %v680
        %694 = vmatprep.subr.mxu0 0.0
        %695 = vmatpush1.msra.mxu0 0.0
        %696 = vmatprep.subr.mxu0 0.0
        %697 = vmatpush1.msra.mxu0 0.0
        %698 = vmatprep.subr.mxu0 0.0
        %699 = vmatpush1.msra.mxu0 0.0
        %700 = vmatprep.subr.mxu0 0.0
        %701 = vmatpush1.msra.mxu0 0.0
        %702 = vmatprep.subr.mxu0 0.0
        %703 = vmatpush1.msra.mxu0 0.0
        %704 = vmatprep.subr.mxu0 0.0
        %705 = vmatpush1.msra.mxu0 0.0
        %706 = vmatprep.subr.mxu0 0.0
        %707 = vmatpush1.msra.mxu0 0.0
        %708 = vmatprep.subr.mxu0 0.0
        %709 = vmatpush1.msra.mxu0 0.0
        %710 = vmatprep.subr.mxu0 0.0
        %711 = vmatpush1.msra.mxu0 0.0
        %712 = vmatprep.subr.mxu0 0.0
        %713 = vmatpush1.msra.mxu0 0.0
        %714 = vmatprep.subr.mxu0 0.0
        %715 = vmatpush1.msra.mxu0 0.0
        %716 = vmatprep.subr.mxu0 0.0
        %717 = vmatpush1.msra.mxu0 0.0
        %718 = vmatprep.subr.mxu0 0.0
        %719 = vmatpush1.msra.mxu0 0.0
        %720 = vmatprep.subr.mxu0 0.0
        %721 = vmatpush1.msra.mxu0 0.0
        %722 = vmatprep.subr.mxu0 0.0
        %723 = vmatpush1.msra.mxu0 0.0
        %724 = vmatprep.subr.mxu0 0.0
        %725 = vmatpush1.msra.mxu0 0.0
        %726 = vmatprep.subr.mxu0 0.0
        %727 = vmatpush1.msra.mxu0 0.0
        %728 = vmatprep.subr.mxu0 0.0
        %729 = vmatpush1.msra.mxu0 0.0
        %730 = vmatprep.subr.mxu0 0.0
        %731 = vmatpush1.msra.mxu0 0.0
        %732 = vmatprep.subr.mxu0 0.0
        %733 = vmatpush1.msra.mxu0 0.0
        %734 = vmatprep.subr.mxu0 0.0
        %735 = vmatpush1.msra.mxu0 0.0
        %736 = vmatprep.subr.mxu0 0.0
        %737 = vmatpush1.msra.mxu0 0.0
        %738 = vmatprep.subr.mxu0 0.0
        %739 = vmatpush1.msra.mxu0 0.0
        %740 = vmatprep.subr.mxu0 0.0
        %741 = vmatpush1.msra.mxu0 0.0
        %742 = vmatprep.subr.mxu0 0.0
        %743 = vmatpush1.msra.mxu0 0.0
        %744 = vmatprep.subr.mxu0 0.0
        %745 = vmatpush1.msra.mxu0 0.0
        %746 = vmatprep.subr.mxu0 0.0
        %747 = vmatpush1.msra.mxu0 0.0
        %748 = vmatprep.subr.mxu0 0.0
        %749 = vmatpush1.msra.mxu0 0.0
        %750 = vmatprep.mubr.f32.mxu0 0.0
        %751 = vmatmul.mubr.f32.gmra.mrb[0].mxu0 %v684
        %v752 = vpop.f32.mrb[0].mxu0
        %v753 = vadd.f32 0.0, %v752
        %v754 = vpop.f32.mrb[0].mxu0
        %v755 = vadd.f32 0.0, %v754
        %756 = vdwg.mxu0
        %757 = vst [vmem:[%s216] sm:$0xff] %v753
        %758 = vst [vmem:[%s216 + $0x8] sm:$0xff] %v755
        %s759 = sand.u32 %s132, 1
        %s760 = scalar_lea.sflag [#allocation4], %s759
        %s761 = sand.u32 %s132, 1
        %s762 = smul.addr %s761, 16
        %s763 = scalar_lea.vmem [#allocation3], %s762
        // Predicated region
        $region37: #{tpu_custom_call.1} parent=35 // pred_check
          %p764 = pneg %p142
        $region38: #{tpu_custom_call.1} parent=35 // pred_check_branch
          %766 = sbr.rel (%p764) target = $region40
        $region39: #{tpu_custom_call.1} parent=35 // pred_region
          %s767 = smul.u32 2, %s24
          %s769 = ssub.s32 256, 256
          %770 = vsyncadd %s760, %s769
          %s771 = smul.addr %s23, 2
          %s772 = sadd.s32 %s767, %s771
          %s773 = smul.addr %s772, 128
          %s774 = scalar_lea.hbm %s4, %s773
          %s776 = sshll.u32 %s763, 4
          %s777 = int_to_ptr.vmem [resolvable:$true] %s776
          %779 = dma.vmem_to_hbm [thread:$0]  %s777, 256, %s774, %s760
        $region40: #{tpu_custom_call.1} parent=35 // pred_fallthru
          _
      $region36: #{tpu_custom_call.1} parent=5 // pred_fallthru
        _
      %p780 = scmp.le.s32.totalorder 2, %s14
      // Predicated region
      $region41: #{tpu_custom_call.1} parent=5 // pred_check
        %p781 = pneg %p780
      $region42: #{tpu_custom_call.1} parent=5 // pred_check_branch
        %783 = sbr.rel (%p781) target = $region44
      $region43: #{tpu_custom_call.1} parent=5 // pred_region
        %s784 = ssub.s32 %s14, 2
        // Predicated region
        $region45: #{tpu_custom_call.1} parent=43 // pred_check
          %p785 = pneg %p148
        $region46: #{tpu_custom_call.1} parent=43 // pred_check_branch
          %787 = sbr.rel (%p785) target = $region48
        $region47: #{tpu_custom_call.1} parent=43 // pred_region
          %s788 = sand.u32 %s133, 1
          %s789 = scalar_lea.sflag [#allocation4], %s788
          %s790 = sand.u32 %s133, 1
          %s791 = smul.addr %s790, 16
          %s792 = scalar_lea.vmem [#allocation3], %s791
          %793 = dma.done %s789, 256
        $region48: #{tpu_custom_call.1} parent=43 // pred_fallthru
          _
      $region44: #{tpu_custom_call.1} parent=5 // pred_fallthru
        _
    $region6: #{tpu_custom_call.1} parent=1 // loop_footer
      %s18 = sadd.s32 1, %s14
    $region7: #{tpu_custom_call.1} parent=1 // loop_footer_branch
      %13 = sbr.rel target = $region3
    $region8: #{tpu_custom_call.1} parent=1 // loop_exit
      _
    %794 = vsyncpa [#allocation4], 1
    %s795 = scalar_lea.sflag [#allocation4], 1
    %796 = vsyncpa %s795, 1

</llo_original>
